<compile_context>
chip_gen: v7x
topology: tpu7x:2x2x1
jax: 0.10.0
libtpu: 0.0.40
codegen_flags: <defaults>
</compile_context>

<pallas_src>
import functools

import jax
import jax.numpy as jnp
from jax.experimental import pallas as pl
from jax.experimental.pallas import tpu as pltpu


def _softshrink_kernel(x_ref, o_ref, *, lambd):
    # Pure elementwise VPU work on the whole (TR, 128) tile.
    x = x_ref[...]
    lam = jnp.asarray(lambd, dtype=x.dtype)
    zero = jnp.zeros((), dtype=x.dtype)
    o_ref[...] = jnp.where(x > lam, x - lam,
                           jnp.where(x < -lam, x + lam, zero))


def _round_up(a: int, b: int) -> int:
    return ((a + b - 1) // b) * b


@functools.partial(jax.jit, static_argnames=("lambd",))
def softshrink(x: jax.Array, lambd: float = 0.5) -> jax.Array:
    orig_shape = x.shape
    dtype = x.dtype
    total = x.size
    if total == 0:
        return x

    LANE = 128          # full vreg lane width -> unmasked stores
    MAX_TR = 2048       # 2048 * 128 * 4 B = 1 MiB f32 block

    rows = _round_up(pl.cdiv(total, LANE), 8)   # sublane-aligned row count
    padded_total = rows * LANE

    flat = x.reshape(-1)
    if padded_total != total:
        # Only pads when total % (8*128) != 0; at most 1023 extra elements.
        flat = jnp.pad(flat, (0, padded_total - total))
    x2 = flat.reshape(rows, LANE)

    # Row tile: as large as possible (amortize per-step overhead) but try to
    # keep >= 2 grid steps so v7x can use both TensorCores.
    if rows >= 16:
        tr = min(MAX_TR, max(8, _round_up((rows + 1) // 2, 8)))
    else:
        tr = rows
    grid = (pl.cdiv(rows, tr),)

    out2 = pl.pallas_call(
        functools.partial(_softshrink_kernel, lambd=float(lambd)),
        out_shape=jax.ShapeDtypeStruct((rows, LANE), dtype),
        grid_spec=pltpu.PrefetchScalarGridSpec(
            num_scalar_prefetch=0,
            grid=grid,
            in_specs=[pl.BlockSpec((tr, LANE), lambda i: (i, 0))],
            out_specs=pl.BlockSpec((tr, LANE), lambda i: (i, 0)),
        ),
        compiler_params=pltpu.CompilerParams(
            dimension_semantics=("parallel",),
        ),
    )(x2)

    out_flat = out2.reshape(-1)
    if padded_total != total:
        out_flat = out_flat[:total]
    return out_flat.reshape(orig_shape)


class Softshrink:
    """Minimal stand-in for torch.nn.Softshrink(lambd)."""

    def __init__(self, lambd: float = 0.5):
        self.lambd = float(lambd)

    def __call__(self, x: jax.Array) -> jax.Array:
        return softshrink(x, lambd=self.lambd)


def _reference_softshrink(x, lambd):
    lam = jnp.asarray(lambd, dtype=x.dtype)
    return jnp.where(x > lam, x - lam,
                     jnp.where(x < -lam, x + lam, jnp.zeros_like(x)))


if __name__ == "__main__":
    key = jax.random.PRNGKey(0)

    # Small NCHW-style input: batch=2, channels=4, spatial=16x16.
    x = jax.random.normal(key, (2, 4, 16, 16), dtype=jnp.float32)

    m = Softshrink()                      # default lambd = 0.5
    y = jax.block_until_ready(m(x))
    ref = _reference_softshrink(x, 0.5)
    assert y.shape == x.shape and y.dtype == x.dtype
    assert jnp.allclose(y, ref, atol=1e-6, rtol=1e-6)

    # Non-default lambd and a shape that exercises the ragged/pad path
    # (2*8*33 = 528 elements, not a multiple of 8*128).
    k2 = jax.random.PRNGKey(0)
    x2 = jax.random.normal(k2, (2, 8, 33), dtype=jnp.float32) * 2.0
    y2 = jax.block_until_ready(softshrink(x2, lambd=0.25))
    ref2 = _reference_softshrink(x2, 0.25)
    assert jnp.allclose(y2, ref2, atol=1e-6, rtol=1e-6)

    # bf16 path (compute stays in bf16, no spurious f32 round-trip).
    x3 = x.astype(jnp.bfloat16)
    y3 = jax.block_until_ready(softshrink(x3))
    ref3 = _reference_softshrink(x3, 0.5)
    assert y3.dtype == jnp.bfloat16
    assert jnp.allclose(y3.astype(jnp.float32), ref3.astype(jnp.float32),
                        atol=1e-2, rtol=1e-2)

    print("KERNEL_OK")
</pallas_src>

<mosaic_0001>
module attributes {stable_mosaic.version = 11 : i64} {
  func.func @_softshrink_kernel(%arg0: i32, %arg1: memref<8x128xf32, #tpu.memory_space<vmem>>, %arg2: memref<8x128xf32, #tpu.memory_space<vmem>>) attributes {dimension_semantics = [#tpu.dimension_semantics<parallel>], iteration_bounds = array<i64: 2>, scalar_prefetch = 0 : i64, scratch_operands = 0 : i64, tpu.core_type = #tpu.core_type<tc>, window_params = [{transform_indices = @transform_0, window_bounds = array<i64: 8, 128>}, {transform_indices = @transform_1, window_bounds = array<i64: 8, 128>}]} {
    %c0 = arith.constant 0 : index
    %c0_0 = arith.constant 0 : index
    %0 = vector.load %arg1[%c0, %c0_0] : memref<8x128xf32, #tpu.memory_space<vmem>>, vector<8x128xf32>
    %cst = arith.constant 5.000000e-01 : f32
    %1 = vector.broadcast %cst : f32 to vector<8x128xf32>
    %2 = arith.cmpf ogt, %0, %1 : vector<8x128xf32>
    %cst_1 = arith.constant 5.000000e-01 : f32
    %3 = vector.broadcast %cst_1 : f32 to vector<8x128xf32>
    %4 = arith.subf %0, %3 : vector<8x128xf32>
    %cst_2 = arith.constant 0.000000e+00 : f32
    %cst_3 = arith.constant 5.000000e-01 : f32
    %5 = arith.subf %cst_2, %cst_3 : f32
    %6 = vector.broadcast %5 : f32 to vector<8x128xf32>
    %7 = arith.cmpf olt, %0, %6 : vector<8x128xf32>
    %cst_4 = arith.constant 5.000000e-01 : f32
    %8 = vector.broadcast %cst_4 : f32 to vector<8x128xf32>
    %9 = arith.addf %0, %8 : vector<8x128xf32>
    %cst_5 = arith.constant 0.000000e+00 : f32
    %10 = vector.broadcast %cst_5 : f32 to vector<8x128xf32>
    %11 = arith.select %7, %9, %10 : vector<8x128xi1>, vector<8x128xf32>
    %12 = arith.select %2, %4, %11 : vector<8x128xi1>, vector<8x128xf32>
    %c0_6 = arith.constant 0 : index
    %c0_7 = arith.constant 0 : index
    %13 = vector.load %arg2[%c0_6, %c0_7] : memref<8x128xf32, #tpu.memory_space<vmem>>, vector<8x128xf32>
    tpu.vector_store %arg2[%c0_6, %c0_7], %12 {strides = array<i32>} : memref<8x128xf32, #tpu.memory_space<vmem>>, vector<8x128xf32>,
    return
  }
  func.func @transform_0(%arg0: i32) -> (i32, i32) {
    %c0_i32 = arith.constant 0 : i32
    %c0_i32_0 = arith.constant 0 : i32
    return %arg0, %c0_i32 : i32, i32
  }
  func.func @transform_1(%arg0: i32) -> (i32, i32) {
    %c0_i32 = arith.constant 0 : i32
    %c0_i32_0 = arith.constant 0 : i32
    return %arg0, %c0_i32 : i32, i32
  }
}

</mosaic_0001>

<llo_original>
// kernel: softshrink.1
$region0: #{softshrink.1}
  #allocation0 [shape = 'u32[]', space=smem, size = 0x4, offset = 0x4, fixed_abs, tag = 'smem constant byte address 0x4 - core index']
  #allocation1 [shape = 'u32[144,128]{1,0:T(1,128)}', space=vmem, size = 0x12000, scoped, tag = 'internal scratch']
  %s0 = inlined_call_operand.vmem [shape: f32[16,128], index: 0, kind: input, shape index: {}]
  %s1 = inlined_call_operand.vmem [shape: f32[16,128], index: 1, kind: output, shape index: {}]
  %s2 = sld [smem:[#allocation0]]
  $region37: #{softshrink.1} parent=0
    _
  %s4 = ssub.s32 1, %s2
  %s5 = scalar_select 0, %s4, %s2
  loop: start=0, step=1, limit=4
  $region2: #{softshrink.1} parent=0 // loop_pre_header
    _
  $region3: #{softshrink.1} parent=0 // loop_header
    %s7 = sphi 0, %s11
    %p8 = scmp.ge.s32.totalorder %s7, 4
    %s17 = sphi 0, %s19
    %s20 = sphi 0, %s17
    %s21 = sphi 0, %s20
    %s37 = sphi 0, %s21
    %s43 = sphi 0, %s45
    %s46 = sphi 0, %s43
    %s47 = sphi 0, %s46
    %s63 = sphi 0, %s47
  $region4: #{softshrink.1} parent=0 // loop_header_branch
    %10 = sbr.rel (%p8) target = $region8
  $region5: #{softshrink.1} parent=0 // loop_body
    %s12 = ssub.s32 %s7, 1
    %s13 = ssub.s32 %s7, 2
    %s14 = sadd.s32 %s7, 1
    %s15 = ssub.s32 %s7, %s14
    %p16 = scmp.eq.s32.totalorder %s15, 0
    %s18 = sadd.s32 %s17, 1
    %s19 = scalar_select %p16, %s17, %s18
    %p22 = pneg %p16
    %p23 = scmp.eq.s32.totalorder %s7, 1
    %p24 = por %p22, %p23
    %p25 = scmp.ne.s32.totalorder %s17, %s20
    %p26 = scmp.eq.s32.totalorder %s7, 0
    %p27 = por %p25, %p26
    %p28 = scmp.ne.s32.totalorder %s17, %s20
    %p29 = scmp.eq.s32.totalorder %s12, 1
    %p30 = por %p28, %p29
    %p31 = scmp.ne.s32.totalorder %s20, %s21
    %p32 = scmp.eq.s32.totalorder %s12, 0
    %p33 = por %p31, %p32
    %p34 = scmp.ne.s32.totalorder %s20, %s21
    %p35 = scmp.eq.s32.totalorder %s13, 1
    %p36 = por %p34, %p35
    %p38 = scmp.ne.s32.totalorder %s21, %s37
    %p39 = scmp.eq.s32.totalorder %s13, 0
    %p40 = por %p38, %p39
    %s41 = ssub.s32 %s7, %s14
    %p42 = scmp.eq.s32.totalorder %s41, 0
    %s44 = sadd.s32 %s43, 1
    %s45 = scalar_select %p42, %s43, %s44
    %p48 = pneg %p42
    %p49 = scmp.eq.s32.totalorder %s7, 1
    %p50 = por %p48, %p49
    %p51 = scmp.ne.s32.totalorder %s43, %s46
    %p52 = scmp.eq.s32.totalorder %s7, 0
    %p53 = por %p51, %p52
    %p54 = scmp.ne.s32.totalorder %s43, %s46
    %p55 = scmp.eq.s32.totalorder %s12, 1
    %p56 = por %p54, %p55
    %p57 = scmp.ne.s32.totalorder %s46, %s47
    %p58 = scmp.eq.s32.totalorder %s12, 0
    %p59 = por %p57, %p58
    %p60 = scmp.ne.s32.totalorder %s46, %s47
    %p61 = scmp.eq.s32.totalorder %s13, 1
    %p62 = por %p60, %p61
    %p64 = scmp.ne.s32.totalorder %s47, %s63
    %p65 = scmp.eq.s32.totalorder %s13, 0
    %p66 = por %p64, %p65
    %p67 = scmp.le.s32.totalorder 1, %s7
    %p68 = scmp.lt.s32.totalorder %s7, 3
    %p69 = pnand %p67, %p68
    %p70 = pneg %p69
    // Predicated region
    $region9: #{softshrink.1} parent=5 // pred_check
      _
    $region10: #{softshrink.1} parent=5 // pred_check_branch
      %72 = sbr.rel (%p69) target = $region12
    $region11: #{softshrink.1} parent=5 // pred_region
      %s73 = ssub.s32 %s7, 1
    $region12: #{softshrink.1} parent=5 // pred_fallthru
      _
    %p74 = scmp.lt.s32.totalorder %s7, 2
    // Predicated region
    $region13: #{softshrink.1} parent=5 // pred_check
      %p75 = pneg %p74
    $region14: #{softshrink.1} parent=5 // pred_check_branch
      %77 = sbr.rel (%p75) target = $region16
    $region15: #{softshrink.1} parent=5 // pred_region
      // Predicated region
      $region17: #{softshrink.1} parent=15 // pred_check
        %p78 = pneg %p27
      $region18: #{softshrink.1} parent=15 // pred_check_branch
        %80 = sbr.rel (%p78) target = $region20
      $region19: #{softshrink.1} parent=15 // pred_region
        %p81 = scmp.lt.s32.totalorder %s7, 1
        %s82 = scalar_select %p81, %s7, 1
        %s83 = smul.addr %s82, 8
        %s84 = scalar_lea.vmem %s0, %s83
      $region20: #{softshrink.1} parent=15 // pred_fallthru
        _
    $region16: #{softshrink.1} parent=5 // pred_fallthru
      _
    %p85 = scmp.le.s32.totalorder 1, %s7
    %p86 = scmp.lt.s32.totalorder %s7, 3
    %p87 = pnand %p85, %p86
    %p88 = pneg %p87
    // Predicated region
    $region21: #{softshrink.1} parent=5 // pred_check
      _
    $region22: #{softshrink.1} parent=5 // pred_check_branch
      %90 = sbr.rel (%p87) target = $region24
    $region23: #{softshrink.1} parent=5 // pred_region
      %s91 = ssub.s32 %s7, 1
      %p92 = scmp.lt.s32.totalorder %s12, 1
      %s93 = scalar_select %p92, %s12, 1
      %s94 = smul.addr %s93, 8
      %s95 = scalar_lea.vmem %s0, %s94
      %p96 = pneg %p33
      %p97 = pneg %p30
      %p98 = pneg %p59
      %p99 = pneg %p56
      %p100 = scmp.lt.s32.totalorder %s12, 1
      %s101 = scalar_select %p100, %s12, 1
      %s102 = smul.addr %s101, 8
      %s103 = scalar_lea.vmem %s1, %s102
      %p104 = scmp.lt.s32.totalorder %s12, 1
      %s105 = scalar_select %p104, %s12, 1
      %s106 = smul.addr %s105, 8
      %s107 = scalar_lea.vmem %s0, %s106
      %p108 = scmp.lt.s32.totalorder %s12, 1
      %s109 = scalar_select %p108, %s12, 1
      %s110 = smul.addr %s109, 8
      %s111 = scalar_lea.vmem %s1, %s110
      %v112 = vld [vmem:[%s107] sm:$0xff]
      %vm113 = vcmp.gt.f32.partialorder %v112, 0.5
      %v114 = vsub.f32 %v112, 0.5
      %vm115 = vcmp.lt.f32.partialorder %v112, -0.5
      %v116 = vadd.f32 %v112, 0.5
      %v117 = vsel %vm115, %v116, 0.0
      %v118 = vsel %vm113, %v114, %v117
      %119 = vst [vmem:[%s111] sm:$0xff] %v118
      %p120 = scmp.lt.s32.totalorder %s12, 1
      %s121 = scalar_select %p120, %s12, 1
      %s122 = smul.addr %s121, 8
      %s123 = scalar_lea.vmem %s1, %s122
      // Predicated region
      $region25: #{softshrink.1} parent=23 // pred_check
        %p124 = pneg %p56
      $region26: #{softshrink.1} parent=23 // pred_check_branch
        %126 = sbr.rel (%p124) target = $region28
      $region27: #{softshrink.1} parent=23 // pred_region
        _
      $region28: #{softshrink.1} parent=23 // pred_fallthru
        _
    $region24: #{softshrink.1} parent=5 // pred_fallthru
      _
    %p127 = scmp.le.s32.totalorder 2, %s7
    // Predicated region
    $region29: #{softshrink.1} parent=5 // pred_check
      %p128 = pneg %p127
    $region30: #{softshrink.1} parent=5 // pred_check_branch
      %130 = sbr.rel (%p128) target = $region32
    $region31: #{softshrink.1} parent=5 // pred_region
      %s131 = ssub.s32 %s7, 2
      // Predicated region
      $region33: #{softshrink.1} parent=31 // pred_check
        %p132 = pneg %p62
      $region34: #{softshrink.1} parent=31 // pred_check_branch
        %134 = sbr.rel (%p132) target = $region36
      $region35: #{softshrink.1} parent=31 // pred_region
        %p135 = scmp.lt.s32.totalorder %s13, 1
        %s136 = scalar_select %p135, %s13, 1
        %s137 = smul.addr %s136, 8
        %s138 = scalar_lea.vmem %s1, %s137
      $region36: #{softshrink.1} parent=31 // pred_fallthru
        _
    $region32: #{softshrink.1} parent=5 // pred_fallthru
      _
  $region6: #{softshrink.1} parent=0 // loop_footer
    %s11 = sadd.s32 1, %s7
  $region7: #{softshrink.1} parent=0 // loop_footer_branch
    %6 = sbr.rel target = $region3
  $region8: #{softshrink.1} parent=0 // loop_exit
    _

</llo_original>
